<compile_context>
chip_gen: v5e
topology: v5e:2x2
jax: 0.10.0
libtpu: 0.0.40
codegen_flags: <defaults>
</compile_context>

<pallas_src>
import functools

import jax
import jax.numpy as jnp
from jax.experimental import pallas as pl
from jax.experimental.pallas import tpu as pltpu


# ---------------------------------------------------------------------------
# Parameter / buffer setup (equivalent of PositionalEncoding.__init__)
# ---------------------------------------------------------------------------
def build_pe_table(d_model: int, max_len: int = 2000) -> jnp.ndarray:
    """Deterministic sin/cos positional-encoding buffer, shape (max_len, d_model)."""
    position = jnp.arange(0, max_len, dtype=jnp.float32)[:, None]            # (max_len, 1)
    i_mat = jnp.power(
        10000.0, jnp.arange(0, d_model, 2, dtype=jnp.float32)[None, :] / d_model
    )                                                                         # (1, ceil(d/2))
    angles = position / i_mat                                                 # (max_len, ceil(d/2))
    pe = jnp.zeros((max_len, d_model), dtype=jnp.float32)
    pe = pe.at[:, 0::2].set(jnp.sin(angles))
    # guard odd d_model: cos columns = floor(d/2)
    pe = pe.at[:, 1::2].set(jnp.cos(angles[:, : d_model // 2]))
    return pe


# ---------------------------------------------------------------------------
# Pallas kernels
# ---------------------------------------------------------------------------
def _pe_add_kernel(x_ref, pe_ref, o_ref):
    # eval / p==0 forward: x + pe (dropout is identity). pe block is (1, S*D)
    # and broadcasts over the row tile.
    o_ref[...] = x_ref[...] + pe_ref[...]


def _pe_add_dropout_kernel(seed_ref, x_ref, pe_ref, o_ref, *,
                           ncols: int, row_tile: int, threshold: int, scale: float):
    # training forward: dropout(x + pe). Counter-based stateless RNG
    # (splitmix32-style integer mixing) -> keep iff hash_bits >= p * 2^32.
    y = x_ref[...] + pe_ref[...]
    shape = y.shape

    rows = pl.program_id(0) * row_tile + jax.lax.broadcasted_iota(jnp.int32, shape, 0)
    cols = jax.lax.broadcasted_iota(jnp.int32, shape, 1)
    ctr = (rows * ncols + cols).astype(jnp.uint32)          # unique per output element

    h = ctr ^ (seed_ref[0].astype(jnp.uint32) * jnp.uint32(0x9E3779B1))
    h = (h ^ (h >> jnp.uint32(16))) * jnp.uint32(0x7FEB352D)
    h = (h ^ (h >> jnp.uint32(15))) * jnp.uint32(0x846CA68B)
    h = h ^ (h >> jnp.uint32(16))

    keep = h >= jnp.uint32(threshold)                       # P(keep) = 1 - p
    o_ref[...] = jnp.where(keep, y * jnp.asarray(scale, y.dtype), jnp.zeros_like(y))


# ---------------------------------------------------------------------------
# Wrapper
# ---------------------------------------------------------------------------
def _pick_row_tile(n_rows: int, row_bytes: int) -> int:
    # Target ~8 MiB per x block: double-buffered x + out (+ resident pe row)
    # stays well under the requested 48 MiB VMEM budget on v5e/v6e/v7x.
    target = 8 * 1024 * 1024
    t = max(1, target // max(1, row_bytes))
    if t >= n_rows or n_rows <= 8:
        return n_rows                      # block dim == full dim -> always legal
    return max(8, (t // 8) * 8)            # keep the sublane dim a multiple of 8


@functools.partial(jax.jit, static_argnames=("dropout_p", "training"))
def positional_encoding_forward(x, pe_table, seed, *, dropout_p=0.0, training=False):
    """x: (B, S, D); pe_table: (max_len, D); seed: (1,) int32."""
    B, S, D = x.shape
    max_len = pe_table.shape[0]
    assert S <= max_len, "sequence longer than positional-encoding table"
    SD = S * D

    # Lane-dense 2D view: each batch element becomes one row of S*D lanes.
    x2 = x.reshape(B, SD)
    pe_flat = pe_table.reshape(1, max_len * D)
    if SD % 128 == 0:
        pe_arg = pe_flat                   # BlockSpec selects the first S*D lanes (no copy)
        pe_block = (1, SD)
    else:
        pe_arg = pe_flat[:, :SD]           # fallback: minimal contiguous slice
        pe_block = (1, SD)

    row_bytes = SD * x.dtype.itemsize
    tB = _pick_row_tile(B, row_bytes)
    grid = (pl.cdiv(B, tB),)
    cparams = pltpu.CompilerParams(
        dimension_semantics=("parallel",),            # rows are independent (megacore on v7x)
        vmem_limit_bytes=48 * 1024 * 1024,
    )

    apply_dropout = bool(training) and float(dropout_p) > 0.0

    if not apply_dropout:
        out2 = pl.pallas_call(
            _pe_add_kernel,
            out_shape=jax.ShapeDtypeStruct((B, SD), x.dtype),
            grid_spec=pltpu.PrefetchScalarGridSpec(
                num_scalar_prefetch=0,
                grid=grid,
                in_specs=[
                    pl.BlockSpec((tB, SD), lambda r: (r, 0)),
                    pl.BlockSpec(pe_block, lambda r: (0, 0)),   # VMEM-resident pe row
                ],
                out_specs=pl.BlockSpec((tB, SD), lambda r: (r, 0)),
            ),
            compiler_params=cparams,
        )(x2, pe_arg)
        return out2.reshape(B, S, D)

    p = float(dropout_p)
    if p >= 1.0:
        return jnp.zeros_like(x)
    threshold = min(int(round(p * (2 ** 32))), 2 ** 32 - 1)
    scale = 1.0 / (1.0 - p)
    kernel = functools.partial(
        _pe_add_dropout_kernel, ncols=SD, row_tile=tB, threshold=threshold, scale=scale
    )
    out2 = pl.pallas_call(
        kernel,
        out_shape=jax.ShapeDtypeStruct((B, SD), x.dtype),
        grid_spec=pltpu.PrefetchScalarGridSpec(
            num_scalar_prefetch=1,             # seed lands in SMEM
            grid=grid,
            in_specs=[
                pl.BlockSpec((tB, SD), lambda r, seed: (r, 0)),
                pl.BlockSpec(pe_block, lambda r, seed: (0, 0)),
            ],
            out_specs=pl.BlockSpec((tB, SD), lambda r, seed: (r, 0)),
        ),
        compiler_params=cparams,
    )(seed, x2, pe_arg)
    return out2.reshape(B, S, D)


# ---------------------------------------------------------------------------
# Main
# ---------------------------------------------------------------------------
if __name__ == "__main__":
    hidden_dim = 32       # d_model of his_pos_emb in ManModel
    max_len = 2000        # ManModel: PositionalEncoding(d_model=hidden_dim, dropout=0, max_len=2000)
    B, S = 2, 8

    pe_table = build_pe_table(hidden_dim, max_len)

    key = jax.random.PRNGKey(0)
    x = jax.random.normal(key, (B, S, hidden_dim), dtype=jnp.float32)
    seed = jnp.array([0], dtype=jnp.int32)

    # ManModel semantics: dropout=0 -> identity; forward is x + pe[:, :S].
    out = positional_encoding_forward(x, pe_table, seed, dropout_p=0.0, training=True)
    out = jax.block_until_ready(out)

    ref = x + pe_table[None, :S, :]
    assert out.shape == x.shape and out.dtype == x.dtype
    assert jnp.allclose(out, ref, atol=1e-6), "mismatch vs reference"

    # Also exercise the dropout kernel path once (p > 0): every output element
    # must be either 0 or (x + pe) / (1 - p).
    p = 0.3
    out_drop = positional_encoding_forward(x, pe_table, seed, dropout_p=p, training=True)
    out_drop = jax.block_until_ready(out_drop)
    scaled = ref / (1.0 - p)
    ok = jnp.logical_or(
        jnp.isclose(out_drop, 0.0, atol=1e-6),
        jnp.isclose(out_drop, scaled, atol=1e-5),
    )
    assert bool(jnp.all(ok)), "dropout output not in {0, (x+pe)/(1-p)}"

    print("KERNEL_OK")
</pallas_src>

<mosaic_0001>
module attributes {stable_mosaic.version = 11 : i64} {
  func.func @_pe_add_kernel(%arg0: i32, %arg1: memref<2x256xf32, #tpu.memory_space<vmem>>, %arg2: memref<1x256xf32, #tpu.memory_space<vmem>>, %arg3: memref<2x256xf32, #tpu.memory_space<vmem>>) attributes {dimension_semantics = [#tpu.dimension_semantics<parallel>], iteration_bounds = array<i64: 1>, scalar_prefetch = 0 : i64, scratch_operands = 0 : i64, tpu.core_type = #tpu.core_type<tc>, window_params = [{transform_indices = @transform_0, window_bounds = array<i64: 2, 256>}, {transform_indices = @transform_1, window_bounds = array<i64: 1, 256>}, {transform_indices = @transform_2, window_bounds = array<i64: 2, 256>}]} {
    %c0 = arith.constant 0 : index
    %c0_0 = arith.constant 0 : index
    %0 = vector.load %arg1[%c0, %c0_0] : memref<2x256xf32, #tpu.memory_space<vmem>>, vector<2x256xf32>
    %c0_1 = arith.constant 0 : index
    %c0_2 = arith.constant 0 : index
    %1 = vector.load %arg2[%c0_1, %c0_2] : memref<1x256xf32, #tpu.memory_space<vmem>>, vector<1x256xf32>
    %2 = vector.broadcast %1 : vector<1x256xf32> to vector<2x256xf32>
    %3 = arith.addf %0, %2 : vector<2x256xf32>
    %c0_3 = arith.constant 0 : index
    %c0_4 = arith.constant 0 : index
    %4 = vector.load %arg3[%c0_3, %c0_4] : memref<2x256xf32, #tpu.memory_space<vmem>>, vector<2x256xf32>
    tpu.vector_store %arg3[%c0_3, %c0_4], %3 {strides = array<i32>} : memref<2x256xf32, #tpu.memory_space<vmem>>, vector<2x256xf32>,
    return
  }
  func.func @transform_0(%arg0: i32) -> (i32, i32) {
    %c0_i32 = arith.constant 0 : i32
    %c0_i32_0 = arith.constant 0 : i32
    return %arg0, %c0_i32 : i32, i32
  }
  func.func @transform_1(%arg0: i32) -> (i32, i32) {
    %c0_i32 = arith.constant 0 : i32
    %c0_i32_0 = arith.constant 0 : i32
    %c0_i32_1 = arith.constant 0 : i32
    return %c0_i32, %c0_i32_0 : i32, i32
  }
  func.func @transform_2(%arg0: i32) -> (i32, i32) {
    %c0_i32 = arith.constant 0 : i32
    %c0_i32_0 = arith.constant 0 : i32
    return %arg0, %c0_i32 : i32, i32
  }
}

</mosaic_0001>

<llo_original>
// kernel: positional_encoding_forward.1
$region0: #{positional_encoding_forward.1}
  #allocation0 [shape = 'u32[]', space=smem, size = 0x4, offset = 0x4, fixed_abs, tag = 'smem constant byte address 0x4 - core index']
  #allocation1 [shape = 'u32[72,128]{1,0:T(1,128)}', space=vmem, size = 0x9000, scoped, tag = 'internal scratch']
  %s0 = inlined_call_operand.vmem [shape: f32[2,256], index: 0, kind: input, shape index: {}]
  %s1 = inlined_call_operand.vmem [shape: f32[1,64000], index: 1, kind: input, shape index: {}]
  %s2 = inlined_call_operand.vmem [shape: f32[2,256], index: 2, kind: output, shape index: {}]
  %s3 = sld [smem:[#allocation0]]
  $region18: #{positional_encoding_forward.1} parent=0
    _
  %s5 = ssub.s32 1, %s3
  %s6 = scalar_select 0, %s5, %s3
  // Predicated region
  $region2: #{positional_encoding_forward.1} parent=0 // pred_check
    _
  $region3: #{positional_encoding_forward.1} parent=0 // pred_check_branch
    %8 = sbr.rel (0) target = $region5
  $region4: #{positional_encoding_forward.1} parent=0 // pred_region
    _
  $region5: #{positional_encoding_forward.1} parent=0 // pred_fallthru
    _
  // Predicated region
  $region6: #{positional_encoding_forward.1} parent=0 // pred_check
    _
  $region7: #{positional_encoding_forward.1} parent=0 // pred_check_branch
    %10 = sbr.rel (0) target = $region9
  $region8: #{positional_encoding_forward.1} parent=0 // pred_region
    _
  $region9: #{positional_encoding_forward.1} parent=0 // pred_fallthru
    _
  %v11 = vld [vmem:[%s0] sm:$0xf]
  %v12 = vld [vmem:[%s1] sm:$0x3]
  %v14 = vperm.slane %v12, 0
  %v15 = vperm.slane %v12, 1
  %v16 = vrot.slane %v15, 6
  %vm17 = vcmask 1041408
  %v18 = vsel %vm17, %v14, %v16
  %v20 = vadd.f32 %v11, %v18
  %21 = vst [vmem:[%s2] sm:$0xf] %v20
  // Predicated region
  $region10: #{positional_encoding_forward.1} parent=0 // pred_check
    _
  $region11: #{positional_encoding_forward.1} parent=0 // pred_check_branch
    %23 = sbr.rel (0) target = $region13
  $region12: #{positional_encoding_forward.1} parent=0 // pred_region
    _
  $region13: #{positional_encoding_forward.1} parent=0 // pred_fallthru
    _
  // Predicated region
  $region14: #{positional_encoding_forward.1} parent=0 // pred_check
    _
  $region15: #{positional_encoding_forward.1} parent=0 // pred_check_branch
    %25 = sbr.rel (0) target = $region17
  $region16: #{positional_encoding_forward.1} parent=0 // pred_region
    _
  $region17: #{positional_encoding_forward.1} parent=0 // pred_fallthru
    _

</llo_original>
